<compile_context>
chip_gen: v7x
topology: tpu7x:2x2x1
jax: 0.10.0
libtpu: 0.0.40
codegen_flags: <defaults>
</compile_context>

<pallas_src>
import math
import functools

import jax
import jax.numpy as jnp
from jax.experimental import pallas as pl
from jax.experimental.pallas import tpu as pltpu


def _round_up(x, m):
    return ((x + m - 1) // m) * m


def gcn_kernel(feat_ref, graph_ref, w_ref, b_ref, out_ref, *, apply_relu):
    """One batch tile (Bt batch elements) per grid step.

    feat_ref:  [Bt, N, Din_pad]     VMEM
    graph_ref: [Bt, N, N]           VMEM
    w_ref:     [Din_pad, Dout_pad]  VMEM (shared across grid)
    b_ref:     [1, Dout_pad]        VMEM (shared across grid)
    out_ref:   [Bt, N, Dout_pad]    VMEM
    """
    bt, n, din = feat_ref.shape
    dout = w_ref.shape[1]

    # Stage 1: (Bt*N, Din_pad) @ (Din_pad, Dout_pad) — one wide MXU matmul
    # instead of Bt tiny ones. The reshape merges leading dims of tile-aligned
    # minor dims, so it is layout-free.
    feat2d = feat_ref[...].reshape(bt * n, din)
    xw = jnp.dot(feat2d, w_ref[...], preferred_element_type=jnp.float32)
    xw = xw.reshape(bt, n, dout)

    # Stage 2: batched adjacency matmul: graph[b] @ xw[b]  (MXU, batched
    # dot_general).  Kept in f32; bf16 cast of the adjacency is a v6e/v7x
    # option if ~1e-2 relative error is acceptable.
    out = jnp.einsum(
        "bnm,bmo->bno", graph_ref[...], xw, preferred_element_type=jnp.float32
    )

    # Bias add (f32, lane-dense) + optional fused ReLU epilogue.
    out = out + b_ref[...]  # (Bt,N,Dout_pad) + (1,Dout_pad) broadcast
    if apply_relu:
        out = jnp.maximum(out, 0.0)
    out_ref[...] = out.astype(out_ref.dtype)


@functools.partial(jax.jit, static_argnames=("apply_relu",))
def base_graph_conv(feature, graph, weight, bias, *, apply_relu=False):
    """output = graph @ (feature @ weight) + bias, batched over dim 0.

    Matches BaseGraphConv.forward; apply_relu=True additionally fuses the
    ReLU that GCN.forward applies after each layer (dropout in eval mode is
    identity).
    """
    B, N, in_dim = feature.shape
    out_dim = weight.shape[1]

    # Lane-pad the contraction / output feature dims to multiples of 128 so
    # every load/store is full-width.  Zero pads are exact (MXU zeros).
    din_pad = _round_up(in_dim, 128)
    dout_pad = _round_up(out_dim, 128)
    feat_p = jnp.pad(feature, ((0, 0), (0, 0), (0, din_pad - in_dim)))
    w_p = jnp.pad(weight, ((0, din_pad - in_dim), (0, dout_pad - out_dim)))
    b_p = jnp.pad(bias, (0, dout_pad - out_dim)).reshape(1, dout_pad)

    # Batch tile: largest divisor of B that is <= 8 (amortizes per-step
    # pipeline overhead while keeping VMEM tiny at these shapes).
    bt = 1
    for d in range(1, min(B, 8) + 1):
        if B % d == 0:
            bt = d
    grid = (B // bt,)

    # TODO(synk): if N grows (N >= 2048) the [N, N] adjacency block must be
    # row-tiled (extra grid axis + VMEM scratch for XW) to fit v7x's 64 MiB
    # VMEM; not needed at these shapes.

    flops = 2 * B * N * (in_dim * out_dim + N * out_dim)
    bytes_accessed = 4 * (
        feat_p.size + graph.size + w_p.size + b_p.size + B * N * dout_pad
    )
    cost = pl.CostEstimate(
        flops=flops, transcendentals=0, bytes_accessed=bytes_accessed
    )

    out_p = pl.pallas_call(
        functools.partial(gcn_kernel, apply_relu=apply_relu),
        out_shape=jax.ShapeDtypeStruct((B, N, dout_pad), feature.dtype),
        grid_spec=pltpu.PrefetchScalarGridSpec(
            num_scalar_prefetch=0,
            grid=grid,
            in_specs=[
                pl.BlockSpec((bt, N, din_pad), lambda b: (b, 0, 0)),
                pl.BlockSpec((bt, N, N), lambda b: (b, 0, 0)),
                pl.BlockSpec((din_pad, dout_pad), lambda b: (0, 0)),
                pl.BlockSpec((1, dout_pad), lambda b: (0, 0)),
            ],
            out_specs=pl.BlockSpec((bt, N, dout_pad), lambda b: (b, 0, 0)),
        ),
        compiler_params=pltpu.CompilerParams(
            dimension_semantics=("parallel",)
        ),
        cost_estimate=cost,
    )(feat_p, graph, w_p, b_p)

    # Slice back to the logical out_dim.
    return out_p[..., :out_dim]


def gcn_forward(feature, graph, weight, bias):
    """GCN.forward with conv_type='base', conv_layer=1, eval mode:
    relu(dropout(BaseGraphConv(feature, graph))) with dropout = identity.
    """
    # TODO(synk): 'direct'/'corr' conv types need integer-label adjacency
    # gathers (bias[graph] sum) and the DotProduct attention block; no clean
    # single-kernel Pallas equivalent here, so only the 'base' path is fused.
    return base_graph_conv(feature, graph, weight, bias, apply_relu=True)


def base_graph_conv_ref(feature, graph, weight, bias):
    # pure-JAX reference: bmm(graph, bmm(feature, W)) + bias
    xw = jnp.einsum("bni,io->bno", feature, weight)
    out = jnp.einsum("bnm,bmo->bno", graph, xw)
    return out + bias[None, None, :]


if __name__ == "__main__":
    # Small shapes consistent with the module's forward:
    # batch=2, num_objs=8, in_dim=16, out_dim=32
    B, N, in_dim, out_dim = 2, 8, 16, 32

    key = jax.random.PRNGKey(0)
    k_feat, k_graph, k_w, k_b = jax.random.split(key, 4)

    feature = jax.random.normal(k_feat, (B, N, in_dim), dtype=jnp.float32)
    # adjacency-like matrix (non-negative, row-normalized)
    adj_raw = jax.random.uniform(k_graph, (B, N, N), dtype=jnp.float32)
    graph = adj_raw / jnp.sum(adj_raw, axis=-1, keepdims=True)

    # deterministic parameter init matching reset_parameters():
    # uniform(-stdv, stdv) with stdv = 1/sqrt(out_dim)
    stdv = 1.0 / math.sqrt(out_dim)
    weight = jax.random.uniform(
        k_w, (in_dim, out_dim), dtype=jnp.float32, minval=-stdv, maxval=stdv
    )
    bias = jax.random.uniform(
        k_b, (out_dim,), dtype=jnp.float32, minval=-stdv, maxval=stdv
    )

    # BaseGraphConv.forward semantics (same contract the original kernel had).
    out = base_graph_conv(feature, graph, weight, bias)
    out = jax.block_until_ready(out)
    ref = base_graph_conv_ref(feature, graph, weight, bias)
    assert out.shape == (B, N, out_dim)
    assert jnp.allclose(out, ref, atol=1e-5, rtol=1e-5), "mismatch vs reference"

    # GCN layer (base conv + ReLU, eval-mode dropout = identity).
    out_relu = jax.block_until_ready(gcn_forward(feature, graph, weight, bias))
    ref_relu = jnp.maximum(ref, 0.0)
    assert jnp.allclose(out_relu, ref_relu, atol=1e-5, rtol=1e-5), "relu mismatch"

    print("KERNEL_OK")
</pallas_src>

<mosaic_0001>
module attributes {stable_mosaic.version = 11 : i64} {
  func.func @gcn_kernel(%arg0: i32, %arg1: memref<2x8x128xf32, #tpu.memory_space<vmem>>, %arg2: memref<2x8x8xf32, #tpu.memory_space<vmem>>, %arg3: memref<128x128xf32, #tpu.memory_space<vmem>>, %arg4: memref<1x128xf32, #tpu.memory_space<vmem>>, %arg5: memref<2x8x128xf32, #tpu.memory_space<vmem>>) attributes {dimension_semantics = [#tpu.dimension_semantics<parallel>], iteration_bounds = array<i64: 1>, scalar_prefetch = 0 : i64, scratch_operands = 0 : i64, tpu.core_type = #tpu.core_type<tc>, window_params = [{transform_indices = @transform_0, window_bounds = array<i64: 2, 8, 128>}, {transform_indices = @transform_1, window_bounds = array<i64: 2, 8, 8>}, {pipeline_mode = #tpu.pipeline_mode<synchronous>, transform_indices = @transform_2, window_bounds = array<i64: 128, 128>}, {pipeline_mode = #tpu.pipeline_mode<synchronous>, transform_indices = @transform_3, window_bounds = array<i64: 1, 128>}, {transform_indices = @transform_4, window_bounds = array<i64: 2, 8, 128>}]} {
    %c0 = arith.constant 0 : index
    %c0_0 = arith.constant 0 : index
    %c0_1 = arith.constant 0 : index
    %0 = vector.load %arg1[%c0, %c0_0, %c0_1] : memref<2x8x128xf32, #tpu.memory_space<vmem>>, vector<2x8x128xf32>
    %1 = vector.shape_cast %0 : vector<2x8x128xf32> to vector<16x128xf32>
    %c0_2 = arith.constant 0 : index
    %c0_3 = arith.constant 0 : index
    %2 = vector.load %arg3[%c0_2, %c0_3] : memref<128x128xf32, #tpu.memory_space<vmem>>, vector<128x128xf32>
    %cst = arith.constant dense<0.000000e+00> : vector<16x128xf32>
    %3 = tpu.matmul %1, %2, %cst {dimension_numbers = #tpu.dot_dimension_numbers<[1], [0], [0], [1], [0, 0, 1, 1], [], []>} : vector<16x128xf32>, vector<128x128xf32>, vector<16x128xf32> -> vector<16x128xf32>
    %4 = vector.shape_cast %3 : vector<16x128xf32> to vector<2x8x128xf32>
    %c0_4 = arith.constant 0 : index
    %c0_5 = arith.constant 0 : index
    %c0_6 = arith.constant 0 : index
    %5 = vector.load %arg2[%c0_4, %c0_5, %c0_6] : memref<2x8x8xf32, #tpu.memory_space<vmem>>, vector<2x8x8xf32>
    "tpu.trace_start"() <{level = 10 : i32, message = "bnm,bmo->bno"}> : () -> ()
    %cst_7 = arith.constant dense<0.000000e+00> : vector<2x8x128xf32>
    %6 = tpu.matmul %5, %4, %cst_7 {dimension_numbers = #tpu.dot_dimension_numbers<[2], [1], [1], [2], [0, 0, 0, 1, 1, 2], [0], [0]>} : vector<2x8x8xf32>, vector<2x8x128xf32>, vector<2x8x128xf32> -> vector<2x8x128xf32>
    "tpu.trace_stop"() : () -> ()
    %c0_8 = arith.constant 0 : index
    %c0_9 = arith.constant 0 : index
    %7 = vector.load %arg4[%c0_8, %c0_9] : memref<1x128xf32, #tpu.memory_space<vmem>>, vector<1x128xf32>
    %8 = vector.shape_cast %7 : vector<1x128xf32> to vector<1x1x128xf32>
    %9 = vector.broadcast %8 : vector<1x1x128xf32> to vector<2x8x128xf32>
    %10 = arith.addf %6, %9 : vector<2x8x128xf32>
    %c0_10 = arith.constant 0 : index
    %c0_11 = arith.constant 0 : index
    %c0_12 = arith.constant 0 : index
    %11 = vector.load %arg5[%c0_10, %c0_11, %c0_12] : memref<2x8x128xf32, #tpu.memory_space<vmem>>, vector<2x8x128xf32>
    tpu.vector_store %arg5[%c0_10, %c0_11, %c0_12], %10 {strides = array<i32>} : memref<2x8x128xf32, #tpu.memory_space<vmem>>, vector<2x8x128xf32>,
    return
  }
  func.func @transform_0(%arg0: i32) -> (i32, i32, i32) {
    %c0_i32 = arith.constant 0 : i32
    %c0_i32_0 = arith.constant 0 : i32
    %c0_i32_1 = arith.constant 0 : i32
    return %arg0, %c0_i32, %c0_i32_0 : i32, i32, i32
  }
  func.func @transform_1(%arg0: i32) -> (i32, i32, i32) {
    %c0_i32 = arith.constant 0 : i32
    %c0_i32_0 = arith.constant 0 : i32
    %c0_i32_1 = arith.constant 0 : i32
    return %arg0, %c0_i32, %c0_i32_0 : i32, i32, i32
  }
  func.func @transform_2(%arg0: i32) -> (i32, i32) {
    %c0_i32 = arith.constant 0 : i32
    %c0_i32_0 = arith.constant 0 : i32
    %c0_i32_1 = arith.constant 0 : i32
    return %c0_i32, %c0_i32_0 : i32, i32
  }
  func.func @transform_3(%arg0: i32) -> (i32, i32) {
    %c0_i32 = arith.constant 0 : i32
    %c0_i32_0 = arith.constant 0 : i32
    %c0_i32_1 = arith.constant 0 : i32
    return %c0_i32, %c0_i32_0 : i32, i32
  }
  func.func @transform_4(%arg0: i32) -> (i32, i32, i32) {
    %c0_i32 = arith.constant 0 : i32
    %c0_i32_0 = arith.constant 0 : i32
    %c0_i32_1 = arith.constant 0 : i32
    return %arg0, %c0_i32, %c0_i32_0 : i32, i32, i32
  }
}

</mosaic_0001>

<llo_original>
// kernel: base_graph_conv.1
$region0: #{base_graph_conv.1}
  #allocation0 [shape = 'u32[]', space=smem, size = 0x4, offset = 0x4, fixed_abs, tag = 'smem constant byte address 0x4 - core index']
  #allocation1 [shape = 'u32[144,128]{1,0:T(1,128)}', space=vmem, size = 0x12000, scoped, tag = 'internal scratch']
  %s0 = inlined_call_operand.vmem [shape: f32[2,8,128], index: 0, kind: input, shape index: {}]
  %s1 = inlined_call_operand.vmem [shape: f32[2,8,8], index: 1, kind: input, shape index: {}]
  %s2 = inlined_call_operand.vmem [shape: f32[128,128], index: 2, kind: input, shape index: {}]
  %s3 = inlined_call_operand.vmem [shape: f32[1,128], index: 3, kind: input, shape index: {}]
  %s4 = inlined_call_operand.hbm [shape: f32[2,8,128], index: 4, kind: output, shape index: {}]
  %s5 = sld [smem:[#allocation0]]
  $region26: #{base_graph_conv.1} parent=0
    _
  %s7 = ssub.s32 1, %s5
  %s8 = scalar_select 0, %s7, %s5
  $region1: #{base_graph_conv.1} parent=0
    #allocation2 [shape = 'u8[8192]{0}', space=vmem, size = 0x2000, scoped, tag = 'output window, operand 0, single buffered']
    #allocation3 [shape = 's32[1]{0}', space=sflag, size = 0x4, scoped, tag = 'scoped memory for base_graph_conv.1']
    %9 = vsyncpa [#allocation3], 0
    // Predicated region
    $region2: #{base_graph_conv.1} parent=1 // pred_check
      _
    $region3: #{base_graph_conv.1} parent=1 // pred_check_branch
      %11 = sbr.rel (0) target = $region5
    $region4: #{base_graph_conv.1} parent=1 // pred_region
      _
    $region5: #{base_graph_conv.1} parent=1 // pred_fallthru
      _
    // Predicated region
    $region6: #{base_graph_conv.1} parent=1 // pred_check
      _
    $region7: #{base_graph_conv.1} parent=1 // pred_check_branch
      %13 = sbr.rel (0) target = $region9
    $region8: #{base_graph_conv.1} parent=1 // pred_region
      _
    $region9: #{base_graph_conv.1} parent=1 // pred_fallthru
      _
    // Predicated region
    $region10: #{base_graph_conv.1} parent=1 // pred_check
      _
    $region11: #{base_graph_conv.1} parent=1 // pred_check_branch
      %15 = sbr.rel (0) target = $region13
    $region12: #{base_graph_conv.1} parent=1 // pred_region
      _
    $region13: #{base_graph_conv.1} parent=1 // pred_fallthru
      _
    // Predicated region
    $region14: #{base_graph_conv.1} parent=1 // pred_check
      _
    $region15: #{base_graph_conv.1} parent=1 // pred_check_branch
      %17 = sbr.rel (0) target = $region17
    $region16: #{base_graph_conv.1} parent=1 // pred_region
      _
    $region17: #{base_graph_conv.1} parent=1 // pred_fallthru
      _
    %v18 = vld [vmem:[%s0] sm:$0xff]
    %v19 = vld [vmem:[%s0 + $0x8] sm:$0xff]
    %v20 = vld [vmem:[%s2] sm:$0xff]
    %v21 = vld [vmem:[%s2 + $0x8] sm:$0xff]
    %v22 = vld [vmem:[%s2 + $0x10] sm:$0xff]
    %v23 = vld [vmem:[%s2 + $0x18] sm:$0xff]
    %v24 = vld [vmem:[%s2 + $0x20] sm:$0xff]
    %v25 = vld [vmem:[%s2 + $0x28] sm:$0xff]
    %v26 = vld [vmem:[%s2 + $0x30] sm:$0xff]
    %v27 = vld [vmem:[%s2 + $0x38] sm:$0xff]
    %v28 = vld [vmem:[%s2 + $0x40] sm:$0xff]
    %v29 = vld [vmem:[%s2 + $0x48] sm:$0xff]
    %v30 = vld [vmem:[%s2 + $0x50] sm:$0xff]
    %v31 = vld [vmem:[%s2 + $0x58] sm:$0xff]
    %v32 = vld [vmem:[%s2 + $0x60] sm:$0xff]
    %v33 = vld [vmem:[%s2 + $0x68] sm:$0xff]
    %v34 = vld [vmem:[%s2 + $0x70] sm:$0xff]
    %v35 = vld [vmem:[%s2 + $0x78] sm:$0xff]
    %36 = vmatprep.subr.mxu0 0.0
    %37 = vmatpush1.msra.mxu0 %v20
    %38 = vmatprep.subr.mxu0 0.0
    %39 = vmatpush1.msra.mxu0 %v21
    %40 = vmatprep.subr.mxu0 0.0
    %41 = vmatpush1.msra.mxu0 %v22
    %42 = vmatprep.subr.mxu0 0.0
    %43 = vmatpush1.msra.mxu0 %v23
    %44 = vmatprep.subr.mxu0 0.0
    %45 = vmatpush1.msra.mxu0 %v24
    %46 = vmatprep.subr.mxu0 0.0
    %47 = vmatpush1.msra.mxu0 %v25
    %48 = vmatprep.subr.mxu0 0.0
    %49 = vmatpush1.msra.mxu0 %v26
    %50 = vmatprep.subr.mxu0 0.0
    %51 = vmatpush1.msra.mxu0 %v27
    %52 = vmatprep.subr.mxu0 0.0
    %53 = vmatpush1.msra.mxu0 %v28
    %54 = vmatprep.subr.mxu0 0.0
    %55 = vmatpush1.msra.mxu0 %v29
    %56 = vmatprep.subr.mxu0 0.0
    %57 = vmatpush1.msra.mxu0 %v30
    %58 = vmatprep.subr.mxu0 0.0
    %59 = vmatpush1.msra.mxu0 %v31
    %60 = vmatprep.subr.mxu0 0.0
    %61 = vmatpush1.msra.mxu0 %v32
    %62 = vmatprep.subr.mxu0 0.0
    %63 = vmatpush1.msra.mxu0 %v33
    %64 = vmatprep.subr.mxu0 0.0
    %65 = vmatpush1.msra.mxu0 %v34
    %66 = vmatprep.subr.mxu0 0.0
    %67 = vmatpush1.msra.mxu0 %v35
    %68 = vmatprep.subr.mxu0 0.0
    %69 = vmatpush1.msra.mxu0 0.0
    %70 = vmatprep.subr.mxu0 0.0
    %71 = vmatpush1.msra.mxu0 0.0
    %72 = vmatprep.subr.mxu0 0.0
    %73 = vmatpush1.msra.mxu0 0.0
    %74 = vmatprep.subr.mxu0 0.0
    %75 = vmatpush1.msra.mxu0 0.0
    %76 = vmatprep.subr.mxu0 0.0
    %77 = vmatpush1.msra.mxu0 0.0
    %78 = vmatprep.subr.mxu0 0.0
    %79 = vmatpush1.msra.mxu0 0.0
    %80 = vmatprep.subr.mxu0 0.0
    %81 = vmatpush1.msra.mxu0 0.0
    %82 = vmatprep.subr.mxu0 0.0
    %83 = vmatpush1.msra.mxu0 0.0
    %84 = vmatprep.subr.mxu0 0.0
    %85 = vmatpush1.msra.mxu0 0.0
    %86 = vmatprep.subr.mxu0 0.0
    %87 = vmatpush1.msra.mxu0 0.0
    %88 = vmatprep.subr.mxu0 0.0
    %89 = vmatpush1.msra.mxu0 0.0
    %90 = vmatprep.subr.mxu0 0.0
    %91 = vmatpush1.msra.mxu0 0.0
    %92 = vmatprep.subr.mxu0 0.0
    %93 = vmatpush1.msra.mxu0 0.0
    %94 = vmatprep.subr.mxu0 0.0
    %95 = vmatpush1.msra.mxu0 0.0
    %96 = vmatprep.subr.mxu0 0.0
    %97 = vmatpush1.msra.mxu0 0.0
    %98 = vmatprep.subr.mxu0 0.0
    %99 = vmatpush1.msra.mxu0 0.0
    %100 = vmatprep.mubr.f32.mxu0 0.0
    %101 = vmatmul.mubr.f32.gmra.mrb[0].mxu0 %v18
    %v102 = vpop.f32.mrb[0].mxu0
    %v103 = vadd.f32 0.0, %v102
    %v104 = vpop.f32.mrb[0].mxu0
    %105 = vmatprep.mubr.f32.mxu0 0.0
    %106 = vmatmul.mubr.f32.gmra.mrb[0].mxu0 %v19
    %v107 = vpop.f32.mrb[0].mxu0
    %v108 = vadd.f32 0.0, %v107
    %v109 = vpop.f32.mrb[0].mxu0
    %110 = vdwg.mxu0
    %v111 = vld [vmem:[%s1] sm:$0xff]
    %v112 = vld [vmem:[%s1 + $0x8] sm:$0xff]
    %v113 = vld [vmem:[%s3] sm:$0x1]
    %v115 = vlaneseq
    %v116 = vshrl.u32 %v115, 7
    %v117 = vsub.s32 0, %v116
    %v118 = vrot.slane %v113, %v117
    %vm120 = vcmask 64512
    %v122 = vsel %vm120, %v111, 0
    %124 = vmatprep.subr.mxu0 0.0
    %125 = vmatpush1.msra.mxu0 %v103
    %126 = vmatprep.subr.mxu0 0.0
    %127 = vmatpush1.msra.mxu0 0.0
    %128 = vmatprep.subr.mxu0 0.0
    %129 = vmatpush1.msra.mxu0 0.0
    %130 = vmatprep.subr.mxu0 0.0
    %131 = vmatpush1.msra.mxu0 0.0
    %132 = vmatprep.subr.mxu0 0.0
    %133 = vmatpush1.msra.mxu0 0.0
    %134 = vmatprep.subr.mxu0 0.0
    %135 = vmatpush1.msra.mxu0 0.0
    %136 = vmatprep.subr.mxu0 0.0
    %137 = vmatpush1.msra.mxu0 0.0
    %138 = vmatprep.subr.mxu0 0.0
    %139 = vmatpush1.msra.mxu0 0.0
    %140 = vmatprep.subr.mxu0 0.0
    %141 = vmatpush1.msra.mxu0 0.0
    %142 = vmatprep.subr.mxu0 0.0
    %143 = vmatpush1.msra.mxu0 0.0
    %144 = vmatprep.subr.mxu0 0.0
    %145 = vmatpush1.msra.mxu0 0.0
    %146 = vmatprep.subr.mxu0 0.0
    %147 = vmatpush1.msra.mxu0 0.0
    %148 = vmatprep.subr.mxu0 0.0
    %149 = vmatpush1.msra.mxu0 0.0
    %150 = vmatprep.subr.mxu0 0.0
    %151 = vmatpush1.msra.mxu0 0.0
    %152 = vmatprep.subr.mxu0 0.0
    %153 = vmatpush1.msra.mxu0 0.0
    %154 = vmatprep.subr.mxu0 0.0
    %155 = vmatpush1.msra.mxu0 0.0
    %156 = vmatprep.subr.mxu0 0.0
    %157 = vmatpush1.msra.mxu0 0.0
    %158 = vmatprep.subr.mxu0 0.0
    %159 = vmatpush1.msra.mxu0 0.0
    %160 = vmatprep.subr.mxu0 0.0
    %161 = vmatpush1.msra.mxu0 0.0
    %162 = vmatprep.subr.mxu0 0.0
    %163 = vmatpush1.msra.mxu0 0.0
    %164 = vmatprep.subr.mxu0 0.0
    %165 = vmatpush1.msra.mxu0 0.0
    %166 = vmatprep.subr.mxu0 0.0
    %167 = vmatpush1.msra.mxu0 0.0
    %168 = vmatprep.subr.mxu0 0.0
    %169 = vmatpush1.msra.mxu0 0.0
    %170 = vmatprep.subr.mxu0 0.0
    %171 = vmatpush1.msra.mxu0 0.0
    %172 = vmatprep.subr.mxu0 0.0
    %173 = vmatpush1.msra.mxu0 0.0
    %174 = vmatprep.subr.mxu0 0.0
    %175 = vmatpush1.msra.mxu0 0.0
    %176 = vmatprep.subr.mxu0 0.0
    %177 = vmatpush1.msra.mxu0 0.0
    %178 = vmatprep.subr.mxu0 0.0
    %179 = vmatpush1.msra.mxu0 0.0
    %180 = vmatprep.subr.mxu0 0.0
    %181 = vmatpush1.msra.mxu0 0.0
    %182 = vmatprep.subr.mxu0 0.0
    %183 = vmatpush1.msra.mxu0 0.0
    %184 = vmatprep.subr.mxu0 0.0
    %185 = vmatpush1.msra.mxu0 0.0
    %186 = vmatprep.subr.mxu0 0.0
    %187 = vmatpush1.msra.mxu0 0.0
    %188 = vmatprep.mubr.f32.mxu0 0.0
    %189 = vmatmul.mubr.f32.gmra.mrb[0].mxu0 %v122
    %v190 = vpop.f32.mrb[0].mxu0
    %v191 = vadd.f32 %v118, %v190
    %v192 = vpop.f32.mrb[0].mxu0
    %193 = vdwg.mxu0
    %v195 = vsel %vm120, %v112, 0
    %197 = vmatprep.subr.mxu0 0.0
    %198 = vmatpush1.msra.mxu0 %v108
    %199 = vmatprep.subr.mxu0 0.0
    %200 = vmatpush1.msra.mxu0 0.0
    %201 = vmatprep.subr.mxu0 0.0
    %202 = vmatpush1.msra.mxu0 0.0
    %203 = vmatprep.subr.mxu0 0.0
    %204 = vmatpush1.msra.mxu0 0.0
    %205 = vmatprep.subr.mxu0 0.0
    %206 = vmatpush1.msra.mxu0 0.0
    %207 = vmatprep.subr.mxu0 0.0
    %208 = vmatpush1.msra.mxu0 0.0
    %209 = vmatprep.subr.mxu0 0.0
    %210 = vmatpush1.msra.mxu0 0.0
    %211 = vmatprep.subr.mxu0 0.0
    %212 = vmatpush1.msra.mxu0 0.0
    %213 = vmatprep.subr.mxu0 0.0
    %214 = vmatpush1.msra.mxu0 0.0
    %215 = vmatprep.subr.mxu0 0.0
    %216 = vmatpush1.msra.mxu0 0.0
    %217 = vmatprep.subr.mxu0 0.0
    %218 = vmatpush1.msra.mxu0 0.0
    %219 = vmatprep.subr.mxu0 0.0
    %220 = vmatpush1.msra.mxu0 0.0
    %221 = vmatprep.subr.mxu0 0.0
    %222 = vmatpush1.msra.mxu0 0.0
    %223 = vmatprep.subr.mxu0 0.0
    %224 = vmatpush1.msra.mxu0 0.0
    %225 = vmatprep.subr.mxu0 0.0
    %226 = vmatpush1.msra.mxu0 0.0
    %227 = vmatprep.subr.mxu0 0.0
    %228 = vmatpush1.msra.mxu0 0.0
    %229 = vmatprep.subr.mxu0 0.0
    %230 = vmatpush1.msra.mxu0 0.0
    %231 = vmatprep.subr.mxu0 0.0
    %232 = vmatpush1.msra.mxu0 0.0
    %233 = vmatprep.subr.mxu0 0.0
    %234 = vmatpush1.msra.mxu0 0.0
    %235 = vmatprep.subr.mxu0 0.0
    %236 = vmatpush1.msra.mxu0 0.0
    %237 = vmatprep.subr.mxu0 0.0
    %238 = vmatpush1.msra.mxu0 0.0
    %239 = vmatprep.subr.mxu0 0.0
    %240 = vmatpush1.msra.mxu0 0.0
    %241 = vmatprep.subr.mxu0 0.0
    %242 = vmatpush1.msra.mxu0 0.0
    %243 = vmatprep.subr.mxu0 0.0
    %244 = vmatpush1.msra.mxu0 0.0
    %245 = vmatprep.subr.mxu0 0.0
    %246 = vmatpush1.msra.mxu0 0.0
    %247 = vmatprep.subr.mxu0 0.0
    %248 = vmatpush1.msra.mxu0 0.0
    %249 = vmatprep.subr.mxu0 0.0
    %250 = vmatpush1.msra.mxu0 0.0
    %251 = vmatprep.subr.mxu0 0.0
    %252 = vmatpush1.msra.mxu0 0.0
    %253 = vmatprep.subr.mxu0 0.0
    %254 = vmatpush1.msra.mxu0 0.0
    %255 = vmatprep.subr.mxu0 0.0
    %256 = vmatpush1.msra.mxu0 0.0
    %257 = vmatprep.subr.mxu0 0.0
    %258 = vmatpush1.msra.mxu0 0.0
    %259 = vmatprep.subr.mxu0 0.0
    %260 = vmatpush1.msra.mxu0 0.0
    %261 = vmatprep.mubr.f32.mxu0 0.0
    %262 = vmatmul.mubr.f32.gmra.mrb[0].mxu0 %v195
    %v263 = vpop.f32.mrb[0].mxu0
    %v264 = vadd.f32 %v118, %v263
    %v265 = vpop.f32.mrb[0].mxu0
    %266 = vdwg.mxu0
    %267 = vst [vmem:[#allocation2] sm:$0xff] %v191
    %268 = vst [vmem:[#allocation2 + $0x8] sm:$0xff] %v264
    // Predicated region
    $region18: #{base_graph_conv.1} parent=1 // pred_check
      _
    $region19: #{base_graph_conv.1} parent=1 // pred_check_branch
      %270 = sbr.rel (0) target = $region21
    $region20: #{base_graph_conv.1} parent=1 // pred_region
      %s272 = ssub.s32 256, 256
      %273 = vsyncadd [#allocation3], %s272
      %s274 = sshll.u32 [#allocation2], 4
      %s275 = int_to_ptr.vmem [resolvable:$true] %s274
      %280 = dma.vmem_to_hbm [thread:$0]  %s275, 256, %s4, [#allocation3], 128, 128, 8
    $region21: #{base_graph_conv.1} parent=1 // pred_fallthru
      _
    // Predicated region
    $region22: #{base_graph_conv.1} parent=1 // pred_check
      _
    $region23: #{base_graph_conv.1} parent=1 // pred_check_branch
      %282 = sbr.rel (0) target = $region25
    $region24: #{base_graph_conv.1} parent=1 // pred_region
      %283 = dma.done [#allocation3], 256
    $region25: #{base_graph_conv.1} parent=1 // pred_fallthru
      _
    %284 = vsyncpa [#allocation3], 1

</llo_original>
